<compile_context>
chip_gen: v6e
topology: v6e:2x2x1
jax: 0.10.0
libtpu: 0.0.40
codegen_flags: <defaults>
</compile_context>

<pallas_src>
import jax
import jax.numpy as jnp
from jax.experimental import pallas as pl
from jax.experimental.pallas import tpu as pltpu

_LANES = 128
_TILE_R_MAX = 1024  # 1024 x 128 x 4B = 512 KiB per f32 tile -> comfortably within
                    # scoped VMEM on v5e/v6e/v7x even with double buffering.


def _bce_elementwise(x, y):
    """Clamped BCE, matching torch.nn.functional.binary_cross_entropy."""
    log_x = jnp.maximum(jnp.log(x), -100.0)
    log_1mx = jnp.maximum(jnp.log(1.0 - x), -100.0)
    return -(y * log_x + (1.0 - y) * log_1mx)


def _bce_none_kernel(x_ref, y_ref, o_ref):
    """reduction='none': elementwise loss, written back in the input dtype."""
    x = x_ref[...].astype(jnp.float32)
    y = y_ref[...].astype(jnp.float32)
    o_ref[...] = _bce_elementwise(x, y).astype(o_ref.dtype)


def _bce_rowsum_kernel(x_ref, y_ref, o_ref):
    """reduction='mean'/'sum': per-row f32 partial sums (reduced in wrapper)."""
    x = x_ref[...].astype(jnp.float32)
    y = y_ref[...].astype(jnp.float32)
    loss = _bce_elementwise(x, y)
    o_ref[...] = jnp.sum(loss, axis=-1, keepdims=True)


def bce_loss(x, y, reduction="mean"):
    """Pallas implementation of BCELoss.forward(x, y)."""
    x = jnp.asarray(x)
    y = jnp.asarray(y)
    # Mirror `y.float()` without forcing an f32 HBM copy: only convert
    # non-float targets; bf16 targets stay bf16 and are cast in-kernel.
    if not jnp.issubdtype(y.dtype, jnp.floating):
        y = y.astype(x.dtype)

    orig_shape = x.shape
    total = int(x.size)

    # Lane-dense packing: flatten to (rows, 128).
    rows = -(-total // _LANES)
    if rows <= _TILE_R_MAX:
        tile_r = max(8, ((rows + 7) // 8) * 8)  # single tile, sublane-aligned
    else:
        tile_r = _TILE_R_MAX
    rows_padded = ((rows + tile_r - 1) // tile_r) * tile_r
    padded_total = rows_padded * _LANES

    x_flat = x.reshape(-1)
    y_flat = y.reshape(-1)
    pad = padded_total - total
    if pad:
        # x=1, y=1 padding -> exactly zero loss contribution.
        x_flat = jnp.concatenate([x_flat, jnp.ones((pad,), x.dtype)])
        y_flat = jnp.concatenate([y_flat, jnp.ones((pad,), y_flat.dtype)])
    x2 = x_flat.reshape(rows_padded, _LANES)
    y2 = y_flat.reshape(rows_padded, _LANES)

    grid = (rows_padded // tile_r,)
    in_specs = [
        pl.BlockSpec((tile_r, _LANES), lambda i: (i, 0)),
        pl.BlockSpec((tile_r, _LANES), lambda i: (i, 0)),
    ]

    if reduction == "none":
        kernel = _bce_none_kernel
        out_shape = jax.ShapeDtypeStruct((rows_padded, _LANES), x.dtype)
        out_spec = pl.BlockSpec((tile_r, _LANES), lambda i: (i, 0))
        out_tile_bytes = tile_r * _LANES * jnp.dtype(x.dtype).itemsize
    else:
        kernel = _bce_rowsum_kernel
        out_shape = jax.ShapeDtypeStruct((rows_padded, 1), jnp.float32)
        out_spec = pl.BlockSpec((tile_r, 1), lambda i: (i, 0))
        out_tile_bytes = tile_r * 4

    in_tile_bytes = tile_r * _LANES * (
        jnp.dtype(x.dtype).itemsize + jnp.dtype(y2.dtype).itemsize
    )
    # 2x for double buffering, plus slack for compiler-internal scratch.
    vmem_limit = min(2 * (in_tile_bytes + out_tile_bytes) + (4 << 20), 48 << 20)

    out = pl.pallas_call(
        kernel,
        out_shape=out_shape,
        grid=grid,
        in_specs=in_specs,
        out_specs=out_spec,
        compiler_params=pltpu.CompilerParams(
            dimension_semantics=("parallel",),
            vmem_limit_bytes=int(vmem_limit),
        ),
    )(x2, y2)

    if reduction == "none":
        return out.reshape(-1)[:total].reshape(orig_shape)

    total_sum = jnp.sum(out)  # padded rows contribute exactly 0
    if reduction == "sum":
        return total_sum
    return total_sum / total  # 'mean': mean over all elements


def _reference(x, y, reduction="mean"):
    """Pure-JAX reference matching F.binary_cross_entropy(x, y.float())."""
    xf = jnp.asarray(x).astype(jnp.float32)
    yf = jnp.asarray(y).astype(jnp.float32)
    loss = _bce_elementwise(xf, yf)
    if reduction == "mean":
        return loss.mean()
    if reduction == "sum":
        return loss.sum()
    return loss.astype(x.dtype)


if __name__ == "__main__":
    key = jax.random.PRNGKey(0)
    kx, ky = jax.random.split(key)

    shape = (2, 4, 16, 16)
    # Probabilities in (0, 1) as BCELoss expects, binary float targets.
    x = jax.nn.sigmoid(jax.random.normal(kx, shape, dtype=jnp.float32))
    y = jax.random.bernoulli(ky, 0.5, shape).astype(jnp.float32)

    out_mean = bce_loss(x, y, reduction="mean")
    jax.block_until_ready(out_mean)
    out_none = bce_loss(x, y, reduction="none")
    jax.block_until_ready(out_none)
    out_sum = bce_loss(x, y, reduction="sum")
    jax.block_until_ready(out_sum)

    ref_mean = _reference(x, y, "mean")
    ref_none = _reference(x, y, "none")
    ref_sum = _reference(x, y, "sum")

    assert jnp.allclose(out_mean, ref_mean, atol=1e-5, rtol=1e-5), (out_mean, ref_mean)
    assert jnp.allclose(out_none, ref_none, atol=1e-5, rtol=1e-5)
    assert jnp.allclose(out_sum, ref_sum, atol=1e-4, rtol=1e-5), (out_sum, ref_sum)

    # bf16 path: inputs DMA'd as bf16 (half the HBM traffic), math in f32 in-kernel.
    xb = x.astype(jnp.bfloat16)
    yb = y.astype(jnp.bfloat16)
    out_bf16 = bce_loss(xb, yb, reduction="mean")
    jax.block_until_ready(out_bf16)
    ref_bf16 = _reference(xb, yb, "mean")
    assert jnp.allclose(out_bf16, ref_bf16, atol=1e-2, rtol=1e-2), (out_bf16, ref_bf16)

    print("KERNEL_OK")
</pallas_src>

<mosaic_0001>
module attributes {stable_mosaic.version = 11 : i64} {
  func.func @_bce_rowsum_kernel(%arg0: i32, %arg1: memref<16x128xf32, #tpu.memory_space<vmem>>, %arg2: memref<16x128xf32, #tpu.memory_space<vmem>>, %arg3: memref<16x1xf32, #tpu.memory_space<vmem>>) attributes {dimension_semantics = [#tpu.dimension_semantics<parallel>], iteration_bounds = array<i64: 1>, scalar_prefetch = 0 : i64, scratch_operands = 0 : i64, tpu.core_type = #tpu.core_type<tc>, window_params = [{transform_indices = @transform_0, window_bounds = array<i64: 16, 128>}, {transform_indices = @transform_1, window_bounds = array<i64: 16, 128>}, {transform_indices = @transform_2, window_bounds = array<i64: 16, 1>}]} {
    %c0 = arith.constant 0 : index
    %c0_0 = arith.constant 0 : index
    %0 = vector.load %arg1[%c0, %c0_0] : memref<16x128xf32, #tpu.memory_space<vmem>>, vector<16x128xf32>
    %c0_1 = arith.constant 0 : index
    %c0_2 = arith.constant 0 : index
    %1 = vector.load %arg2[%c0_1, %c0_2] : memref<16x128xf32, #tpu.memory_space<vmem>>, vector<16x128xf32>
    %2 = math.log %0 : vector<16x128xf32>
    %cst = arith.constant -1.000000e+02 : f32
    %3 = vector.broadcast %cst : f32 to vector<16x128xf32>
    %4 = arith.maximumf %2, %3 : vector<16x128xf32>
    %cst_3 = arith.constant 1.000000e+00 : f32
    %5 = vector.broadcast %cst_3 : f32 to vector<16x128xf32>
    %6 = arith.subf %5, %0 : vector<16x128xf32>
    %7 = math.log %6 : vector<16x128xf32>
    %cst_4 = arith.constant -1.000000e+02 : f32
    %8 = vector.broadcast %cst_4 : f32 to vector<16x128xf32>
    %9 = arith.maximumf %7, %8 : vector<16x128xf32>
    %10 = arith.mulf %1, %4 : vector<16x128xf32>
    %cst_5 = arith.constant 1.000000e+00 : f32
    %11 = vector.broadcast %cst_5 : f32 to vector<16x128xf32>
    %12 = arith.subf %11, %1 : vector<16x128xf32>
    %13 = arith.mulf %12, %9 : vector<16x128xf32>
    %14 = arith.addf %10, %13 : vector<16x128xf32>
    %cst_6 = arith.constant 0.000000e+00 : f32
    %15 = vector.broadcast %cst_6 : f32 to vector<16x128xf32>
    %16 = arith.subf %15, %14 : vector<16x128xf32>
    %cst_7 = arith.constant dense<0.000000e+00> : vector<16xf32>
    %17 = vector.multi_reduction <add>, %16, %cst_7 [1] : vector<16x128xf32> to vector<16xf32>
    %18 = vector.shape_cast %17 : vector<16xf32> to vector<16x1xf32>
    %c0_8 = arith.constant 0 : index
    %c0_9 = arith.constant 0 : index
    %19 = vector.load %arg3[%c0_8, %c0_9] : memref<16x1xf32, #tpu.memory_space<vmem>>, vector<16x1xf32>
    tpu.vector_store %arg3[%c0_8, %c0_9], %18 {strides = array<i32>} : memref<16x1xf32, #tpu.memory_space<vmem>>, vector<16x1xf32>,
    return
  }
  func.func @transform_0(%arg0: i32) -> (i32, i32) {
    %c0_i32 = arith.constant 0 : i32
    %c0_i32_0 = arith.constant 0 : i32
    return %arg0, %c0_i32 : i32, i32
  }
  func.func @transform_1(%arg0: i32) -> (i32, i32) {
    %c0_i32 = arith.constant 0 : i32
    %c0_i32_0 = arith.constant 0 : i32
    return %arg0, %c0_i32 : i32, i32
  }
  func.func @transform_2(%arg0: i32) -> (i32, i32) {
    %c0_i32 = arith.constant 0 : i32
    %c0_i32_0 = arith.constant 0 : i32
    return %arg0, %c0_i32 : i32, i32
  }
}

</mosaic_0001>

<llo_original>
// kernel: tpu_custom_call.1
$region0: #{tpu_custom_call.1}
  #allocation0 [shape = 'u32[]', space=smem, size = 0x4, offset = 0x4, fixed_abs, tag = 'smem constant byte address 0x4 - core index']
  #allocation1 [shape = 'u32[144,128]{1,0:T(1,128)}', space=vmem, size = 0x12000, scoped, tag = 'internal scratch']
  %s0 = inlined_call_operand.hbm [shape: f32[16,128], index: 0, kind: input, shape index: {}]
  %s1 = inlined_call_operand.hbm [shape: f32[16,128], index: 1, kind: input, shape index: {}]
  %s2 = inlined_call_operand.vmem [shape: f32[16,1], index: 2, kind: output, shape index: {}]
  %s3 = sld [smem:[#allocation0]]
  $region26: #{tpu_custom_call.1} parent=0
    _
  %s5 = ssub.s32 1, %s3
  %s6 = scalar_select 0, %s5, %s3
  $region1: #{tpu_custom_call.1} parent=0
    #allocation2 [shape = 'u8[8192]{0}', space=vmem, size = 0x2000, scoped, tag = 'input window, operand 0, single buffered']
    #allocation3 [shape = 's32[1]{0}', space=sflag, size = 0x4, scoped, tag = 'scoped memory for tpu_custom_call.1']
    #allocation4 [shape = 'u8[8192]{0}', space=vmem, size = 0x2000, scoped, tag = 'input window, operand 1, single buffered']
    #allocation5 [shape = 's32[1]{0}', space=sflag, size = 0x4, scoped, tag = 'scoped memory for tpu_custom_call.1']
    %7 = vsyncpa [#allocation3], 0
    %8 = vsyncpa [#allocation5], 0
    // Predicated region
    $region2: #{tpu_custom_call.1} parent=1 // pred_check
      _
    $region3: #{tpu_custom_call.1} parent=1 // pred_check_branch
      %10 = sbr.rel (0) target = $region5
    $region4: #{tpu_custom_call.1} parent=1 // pred_region
      %s12 = ssub.s32 256, 256
      %13 = vsyncadd [#allocation3], %s12
      %s14 = sshll.u32 [#allocation2], 4
      %s15 = int_to_ptr.vmem [resolvable:$true] %s14
      %20 = dma.hbm_to_vmem [thread:$0]  %s0, 256, %s15, [#allocation3], 128, 128, 8
    $region5: #{tpu_custom_call.1} parent=1 // pred_fallthru
      _
    // Predicated region
    $region6: #{tpu_custom_call.1} parent=1 // pred_check
      _
    $region7: #{tpu_custom_call.1} parent=1 // pred_check_branch
      %22 = sbr.rel (0) target = $region9
    $region8: #{tpu_custom_call.1} parent=1 // pred_region
      %s24 = ssub.s32 256, 256
      %25 = vsyncadd [#allocation5], %s24
      %s26 = sshll.u32 [#allocation4], 4
      %s27 = int_to_ptr.vmem [resolvable:$true] %s26
      %32 = dma.hbm_to_vmem [thread:$0]  %s1, 256, %s27, [#allocation5], 128, 128, 8
    $region9: #{tpu_custom_call.1} parent=1 // pred_fallthru
      _
    // Predicated region
    $region10: #{tpu_custom_call.1} parent=1 // pred_check
      _
    $region11: #{tpu_custom_call.1} parent=1 // pred_check_branch
      %34 = sbr.rel (0) target = $region13
    $region12: #{tpu_custom_call.1} parent=1 // pred_region
      %35 = dma.done [#allocation3], 256
    $region13: #{tpu_custom_call.1} parent=1 // pred_fallthru
      _
    // Predicated region
    $region14: #{tpu_custom_call.1} parent=1 // pred_check
      _
    $region15: #{tpu_custom_call.1} parent=1 // pred_check_branch
      %37 = sbr.rel (0) target = $region17
    $region16: #{tpu_custom_call.1} parent=1 // pred_region
      %38 = dma.done [#allocation5], 256
    $region17: #{tpu_custom_call.1} parent=1 // pred_fallthru
      _
    %v39 = vld [vmem:[#allocation2] sm:$0xff]
    %v40 = vld [vmem:[#allocation2 + $0x8] sm:$0xff]
    %v41 = vld [vmem:[#allocation4] sm:$0xff]
    %v42 = vld [vmem:[#allocation4 + $0x8] sm:$0xff]
    %v43 = vlog2.pop %v39
    %v44 = vmul.f32 %v43, 0.6931472
    %v45 = vlog2.pop %v40
    %v46 = vmul.f32 %v45, 0.6931472
    %v47 = vmax.f32 %v44, -100.0
    %v48 = vmax.f32 %v46, -100.0
    %v49 = vsub.f32 1.0, %v39
    %v50 = vsub.f32 1.0, %v40
    %v51 = vlog2.pop %v49
    %v52 = vmul.f32 %v51, 0.6931472
    %v53 = vlog2.pop %v50
    %v54 = vmul.f32 %v53, 0.6931472
    %v55 = vmax.f32 %v52, -100.0
    %v56 = vmax.f32 %v54, -100.0
    %v57 = vmul.f32 %v41, %v47
    %v58 = vmul.f32 %v42, %v48
    %v59 = vsub.f32 1.0, %v41
    %v60 = vsub.f32 1.0, %v42
    %v61 = vmul.f32 %v59, %v55
    %v62 = vmul.f32 %v60, %v56
    %v63 = vadd.f32 %v57, %v61
    %v64 = vadd.f32 %v58, %v62
    %v65 = vsub.f32 0.0, %v63
    %v66 = vsub.f32 0.0, %v64
    %67 = vadd.xlane.f32.xlu0 %v65
    %v68 = vpop.xlane.xlu0 %67
    %69 = vadd.xlane.f32.xlu0 %v66
    %v70 = vpop.xlane.xlu0 %69
    %vm71 = vcmask 7168
    %72 = vst.msk [vmem:[%s2] sm:$0xff] %vm71, %v68
    %73 = vst.msk [vmem:[%s2 + $0x8] sm:$0xff] %vm71, %v70
    // Predicated region
    $region18: #{tpu_custom_call.1} parent=1 // pred_check
      _
    $region19: #{tpu_custom_call.1} parent=1 // pred_check_branch
      %75 = sbr.rel (0) target = $region21
    $region20: #{tpu_custom_call.1} parent=1 // pred_region
      _
    $region21: #{tpu_custom_call.1} parent=1 // pred_fallthru
      _
    // Predicated region
    $region22: #{tpu_custom_call.1} parent=1 // pred_check
      _
    $region23: #{tpu_custom_call.1} parent=1 // pred_check_branch
      %77 = sbr.rel (0) target = $region25
    $region24: #{tpu_custom_call.1} parent=1 // pred_region
      _
    $region25: #{tpu_custom_call.1} parent=1 // pred_fallthru
      _
    %78 = vsyncpa [#allocation3], 1
    %79 = vsyncpa [#allocation5], 1

</llo_original>
